<compile_context>
chip_gen: v7x
topology: tpu7x:2x2x1
jax: 0.10.0
libtpu: 0.0.40
codegen_flags: <defaults>
</compile_context>

<pallas_src>
import functools

import jax
import jax.numpy as jnp
import numpy as np
from jax import lax
from jax.experimental import pallas as pl
from jax.experimental.pallas import tpu as pltpu


def _round_up(v, m):
    return -(-v // m) * m


def _pre_shift_ff_kernel(*refs, S, TS, H, shift_plan, has_prev, has_next, has_mask):
    """refs = [(mask_cur)?, x_cur, (mask_prev)?, (x_prev)?, (mask_next)?, (x_next)?,
               w, b, out, xs_scratch]."""
    it = iter(refs)
    m_cur_ref = next(it) if has_mask else None
    x_cur_ref = next(it)
    m_prev_ref = next(it) if (has_prev and has_mask) else None
    x_prev_ref = next(it) if has_prev else None
    m_next_ref = next(it) if (has_next and has_mask) else None
    x_next_ref = next(it) if has_next else None
    w_ref, b_ref, o_ref, xs_ref = next(it), next(it), next(it), next(it)

    si = pl.program_id(1)

    # Build the shifted tile once per (batch, seq-tile); persist it in bf16
    # VMEM scratch and reuse it for every feature tile nj (nj is "arbitrary").
    @pl.when(pl.program_id(2) == 0)
    def _build():
        x = x_cur_ref[0]                       # (TS, Dp)
        Dp = x.shape[-1]
        shifted = x                            # shift==0 segs / rest / padding: raw, un-masked

        if shift_plan:
            x_m = x * m_cur_ref[0] if has_mask else x        # mask once per tile
            lane = lax.broadcasted_iota(jnp.int32, (1, Dp), 1)   # row-invariant lane id
            local_row = lax.broadcasted_iota(jnp.int32, (TS, 1), 0)
            row_g = si * TS + local_row                          # global sequence row
            R = TS // H
            row3 = local_row.reshape(R, H, 1) if (has_prev or has_next) else None
            if has_prev:
                prev_h = x_prev_ref[0] * m_prev_ref[0] if has_mask else x_prev_ref[0]
            if has_next:
                next_h = x_next_ref[0] * m_next_ref[0] if has_mask else x_next_ref[0]

            def roll_rows(v, sh):
                return v if sh == 0 else pltpu.roll(v, shift=sh, axis=0)

            for a, lane_ranges in shift_plan:   # static: one pass per distinct nonzero shift
                if a > 0:
                    # out[r] <- masked x[r - a]; r - a < 0 comes from prev tile or zero fill.
                    src = roll_rows(x_m, a % TS)
                    if has_prev:
                        ph = roll_rows(prev_h, a % H)    # rows [0, a) hold prev_tile[TS-a+r]
                        src = jnp.where(row3 < a, ph[None],
                                        src.reshape(R, H, Dp)).reshape(TS, Dp)
                    valid = row_g >= a
                else:
                    k = -a
                    # out[r] <- masked x[r + k]; r + k >= TS comes from next tile or zero fill.
                    src = roll_rows(x_m, (TS - k) % TS)
                    if has_next:
                        nh = roll_rows(next_h, (H - k) % H)  # last k rows hold next_tile[r+k-TS]
                        src = jnp.where(row3 >= TS - k, nh[None],
                                        src.reshape(R, H, Dp)).reshape(TS, Dp)
                    valid = row_g < (S + a)

                # Zero-fill rows outside the sequence (F.pad semantics), THEN select lanes.
                src = jnp.where(valid, src, 0.0)
                seg_lanes = None                # lanes owned by segments with this shift
                for lo, hi in lane_ranges:
                    r = (lane >= lo) & (lane < hi)
                    seg_lanes = r if seg_lanes is None else (seg_lanes | r)
                shifted = jnp.where(seg_lanes, src, shifted)

        xs_ref[...] = shifted.astype(jnp.bfloat16)

    # fn = Linear(D, D): bf16 MXU matmul, f32 accumulation, f32 bias.
    out = jnp.dot(xs_ref[...], w_ref[...], preferred_element_type=jnp.float32) + b_ref[...]
    o_ref[0] = out.astype(o_ref.dtype)


def pre_shift_tokens_ff(x, mask, w, b, shifts, *, ts=None, tn=None, out_dtype=jnp.float32):
    """PreShiftTokens(shifts, fn=Linear(D, D)) forward.

    x: (B, S, D), mask: (B, S) bool or None, w: (D, D), b: (D,).
    x may be f32 or bf16 (bf16 halves the dominant HBM stream; the MXU runs
    bf16 either way).  out_dtype=jnp.bfloat16 similarly halves the write stream.
    """
    B, S, D = x.shape
    shifts = tuple(int(a) for a in shifts)
    segments = len(shifts)
    assert segments >= 1 and D // segments >= 1
    fps = D // segments

    max_sh = max((abs(a) for a in shifts), default=0)
    H = _round_up(max(max_sh, 8), 8)          # halo rows (covers |shift| <= H)
    # TODO(synk): shifts larger than one halo block would need multi-tile halos.
    assert max_sh <= H

    itemsize = jnp.dtype(x.dtype).itemsize
    out_itemsize = jnp.dtype(out_dtype).itemsize
    Dp = _round_up(D, 128)                    # lane-dense feature dim

    # ---- generation-aware VMEM budget (conservative fallback = v7x 64 MiB) --
    try:
        cap_bytes = int(pltpu.get_tpu_info().vmem_capacity_bytes)
        cap_bytes = max(cap_bytes, 32 << 20)
    except Exception:
        cap_bytes = 64 << 20
    small_vmem = cap_bytes <= (64 << 20)
    tile_target_bytes = (2 << 20) if small_vmem else (4 << 20)   # ~2-4 MiB x tile
    resident_cap = 1024 if small_vmem else 2048                  # keep W resident up to this Dp

    # ---- sequence tile (S padded to a multiple of it) ------------------------
    if ts is None:
        rows = max(H, (tile_target_bytes // max(Dp * itemsize, 1)) // H * H)
        ts = min(max(rows, H), 512, _round_up(S, H))
        ts = max(ts - ts % H, H)
    assert ts % H == 0
    TS = ts
    Sp = _round_up(S, TS)

    # ---- feature tiles (NN == 1 preferred: W stays VMEM-resident) ------------
    if tn is None:
        tn = Dp if Dp <= resident_cap else max(
            t for t in (2048, 1024, 512, 256, 128) if Dp % t == 0)
    assert Dp % tn == 0 and tn % 128 == 0
    TN = tn
    NS, NN, R = Sp // TS, Dp // TN, TS // H

    # ---- static shift plan: distinct nonzero shift -> contiguous lane ranges --
    shift_plan = []
    for a in sorted({a for a in shifts if a != 0}):
        idxs = [i for i, s_ in enumerate(shifts) if s_ == a]
        ranges, start, prev = [], idxs[0], idxs[0]
        for i in idxs[1:]:
            if i == prev + 1:
                prev = i
            else:
                ranges.append((start * fps, (prev + 1) * fps))
                start = prev = i
        ranges.append((start * fps, (prev + 1) * fps))
        shift_plan.append((a, tuple(ranges)))
    shift_plan = tuple(shift_plan)

    # halos only when a shifted row can actually come from a neighbouring seq tile
    has_prev = any(a > 0 for a, _ in shift_plan) and NS > 1
    has_next = any(a < 0 for a, _ in shift_plan) and NS > 1
    has_mask = (mask is not None) and bool(shift_plan)

    # ---- operands (pad S to Sp, features to 128 lanes; W in bf16) ------------
    xp = jnp.pad(x, ((0, 0), (0, Sp - S), (0, Dp - D)))
    if has_mask:
        # TODO(synk): (B, S, 1) blocks pad to 128 lanes in VMEM; tiny cost, could
        # be folded into a lane-dense layout if it ever shows up in profiles.
        mask_p = jnp.pad(mask.astype(x.dtype)[..., None], ((0, 0), (0, Sp - S), (0, 0)))
    wp = (jnp.pad(w, ((0, Dp - D), (0, Dp - D))) if Dp > D else w).astype(jnp.bfloat16)
    bp = (jnp.pad(b, (0, Dp - D)) if Dp > D else b).astype(jnp.float32).reshape(1, Dp)

    # ---- block specs ----------------------------------------------------------
    def cur_idx(bi, si, nj):
        return (bi, si, 0)

    def prev_idx(bi, si, nj):                 # last H rows of the previous seq tile
        return (bi, jnp.maximum(si * R - 1, 0), 0)

    def next_idx(bi, si, nj):                 # first H rows of the next seq tile
        return (bi, jnp.minimum((si + 1) * R, Sp // H - 1), 0)

    in_specs, args = [], []
    if has_mask:
        in_specs.append(pl.BlockSpec((1, TS, 1), cur_idx)); args.append(mask_p)
    in_specs.append(pl.BlockSpec((1, TS, Dp), cur_idx)); args.append(xp)
    if has_prev:
        if has_mask:
            in_specs.append(pl.BlockSpec((1, H, 1), prev_idx)); args.append(mask_p)
        in_specs.append(pl.BlockSpec((1, H, Dp), prev_idx)); args.append(xp)
    if has_next:
        if has_mask:
            in_specs.append(pl.BlockSpec((1, H, 1), next_idx)); args.append(mask_p)
        in_specs.append(pl.BlockSpec((1, H, Dp), next_idx)); args.append(xp)
    in_specs += [pl.BlockSpec((Dp, TN), lambda bi, si, nj: (0, nj)),   # W (resident if NN==1)
                 pl.BlockSpec((1, TN), lambda bi, si, nj: (0, nj))]    # bias
    args += [wp, bp]

    out_spec = pl.BlockSpec((1, TS, TN), lambda bi, si, nj: (bi, si, nj))

    kernel = functools.partial(
        _pre_shift_ff_kernel, S=S, TS=TS, H=H, shift_plan=shift_plan,
        has_prev=has_prev, has_next=has_next, has_mask=has_mask)

    cost = pl.CostEstimate(
        flops=2 * B * Sp * Dp * Dp,
        transcendentals=0,
        bytes_accessed=int(B * Sp * Dp * itemsize + B * Sp * Dp * out_itemsize
                           + (B * Sp * itemsize if has_mask else 0)
                           + Dp * Dp * 2 + Dp * 4))

    # Per-step VMEM estimate: double-buffered blocks + bf16 scratch + live temps.
    n_halo = int(has_prev) + int(has_next)
    blk = (TS * Dp * itemsize
           + (TS * 128 * itemsize if has_mask else 0)
           + n_halo * (H * Dp * itemsize + (H * 128 * itemsize if has_mask else 0))
           + Dp * TN * 2 + 8 * TN * 4 + TS * TN * 4)
    vmem_est = 2 * blk + TS * Dp * 2 + 4 * TS * Dp * itemsize
    cp_kwargs = dict(dimension_semantics=("parallel", "parallel", "arbitrary"))
    if vmem_est > 12 * 1024 * 1024:            # below v5e's 16 MiB default scoped limit
        cp_kwargs["vmem_limit_bytes"] = int(min(vmem_est + (8 << 20),
                                                int(cap_bytes * 0.85)))

    out = pl.pallas_call(
        kernel,
        out_shape=jax.ShapeDtypeStruct((B, Sp, Dp), out_dtype),
        grid=(B, NS, NN),
        in_specs=in_specs,
        out_specs=out_spec,
        scratch_shapes=[pltpu.VMEM((TS, Dp), jnp.bfloat16)],   # shifted tile, reused over nj
        compiler_params=pltpu.CompilerParams(**cp_kwargs),
        cost_estimate=cost,
    )(*args)

    return out[:, :S, :D]


def _reference(x, mask, w, b, shifts):
    """Pure-JAX mirror of the PyTorch forward (bf16 MXU matmul, f32 accumulation,
    matching the kernel's deliberate precision choice)."""
    B, S, D = x.shape
    segments = len(shifts)
    fps = D // segments
    parts = []
    for i, a in enumerate(shifts):
        seg = x[..., i * fps:(i + 1) * fps]
        if a == 0:
            parts.append(seg)
            continue
        if mask is not None:
            seg = jnp.where(mask[..., None], seg, 0.0)
        if a > 0:                              # F.pad(t, (0, 0, a, -a))
            seg = jnp.pad(seg, ((0, 0), (a, 0), (0, 0)))[:, :S, :]
        else:
            seg = jnp.pad(seg, ((0, 0), (0, -a), (0, 0)))[:, -a:, :]
        parts.append(seg)
    if segments * fps < D:
        parts.append(x[..., segments * fps:])
    xs = jnp.concatenate(parts, axis=-1)
    out = jnp.einsum("bsd,de->bse", xs.astype(jnp.bfloat16), w.astype(jnp.bfloat16),
                     preferred_element_type=jnp.float32)
    return out + b.astype(jnp.float32)


if __name__ == "__main__":
    configs = [
        # (B, S, D, shifts, seq_tile, feat_tile, use_mask)
        (2, 8, 32, (0, 1), None, None, True),       # single seq tile, no halos
        (2, 16, 32, (-1, 0, 1), 8, None, True),     # 2 seq tiles, +/- halos, "rest" feats
        (1, 12, 64, (2, -2), None, None, False),    # ragged S (padded), no mask
        (2, 16, 256, (1, -1), 8, 128, True),        # NN=2: scratch reused across feature tiles
    ]
    key = jax.random.PRNGKey(0)
    for (B, S, D, shifts, seq_tile, feat_tile, use_mask) in configs:
        key, kx, km, kw, kb = jax.random.split(key, 5)
        x = jax.random.normal(kx, (B, S, D), dtype=jnp.float32)
        mask = (jax.random.uniform(km, (B, S)) > 0.2) if use_mask else None
        w = jax.random.normal(kw, (D, D), dtype=jnp.float32) / jnp.sqrt(D)
        b = jax.random.normal(kb, (D,), dtype=jnp.float32) * 0.01

        out = jax.block_until_ready(
            pre_shift_tokens_ff(x, mask, w, b, shifts, ts=seq_tile, tn=feat_tile))
        ref = _reference(x, mask, w, b, shifts)
        np.testing.assert_allclose(np.asarray(out), np.asarray(ref),
                                   rtol=2e-2, atol=2e-2)
    print("KERNEL_OK")
</pallas_src>

<mosaic_0001>
module attributes {stable_mosaic.version = 11 : i64} {
  func.func @_pre_shift_ff_kernel(%arg0: i32, %arg1: i32, %arg2: i32, %arg3: memref<1x8x1xf32, #tpu.memory_space<vmem>>, %arg4: memref<1x8x128xf32, #tpu.memory_space<vmem>>, %arg5: memref<128x128xbf16, #tpu.memory_space<vmem>>, %arg6: memref<1x128xf32, #tpu.memory_space<vmem>>, %arg7: memref<1x8x128xf32, #tpu.memory_space<vmem>>, %arg8: memref<8x128xbf16, #tpu.memory_space<vmem>>) attributes {dimension_semantics = [#tpu.dimension_semantics<parallel>, #tpu.dimension_semantics<parallel>, #tpu.dimension_semantics<arbitrary>], iteration_bounds = array<i64: 2, 1, 1>, scalar_prefetch = 0 : i64, scratch_operands = 1 : i64, tpu.core_type = #tpu.core_type<tc>, window_params = [{transform_indices = @transform_0, window_bounds = array<i64: 1, 8, 1>}, {transform_indices = @transform_1, window_bounds = array<i64: 1, 8, 128>}, {transform_indices = @transform_2, window_bounds = array<i64: 128, 128>}, {transform_indices = @transform_3, window_bounds = array<i64: 1, 128>}, {transform_indices = @transform_4, window_bounds = array<i64: 1, 8, 128>}]} {
    %c0_i32 = arith.constant 0 : i32
    %0 = arith.cmpi eq, %arg2, %c0_i32 : i32
    %1 = arith.extui %0 : i1 to i32
    %c0_i32_0 = arith.constant 0 : i32
    %2 = arith.cmpi ne, %1, %c0_i32_0 : i32
    scf.if %2 {
      %c0_9 = arith.constant 0 : index
      %c0_10 = arith.constant 0 : index
      %c0_11 = arith.constant 0 : index
      %12 = vector.load %arg4[%c0_9, %c0_10, %c0_11] : memref<1x8x128xf32, #tpu.memory_space<vmem>>, vector<1x8x128xf32>
      %13 = vector.shape_cast %12 : vector<1x8x128xf32> to vector<8x128xf32>
      %c0_12 = arith.constant 0 : index
      %c0_13 = arith.constant 0 : index
      %c0_14 = arith.constant 0 : index
      %14 = vector.load %arg3[%c0_12, %c0_13, %c0_14] : memref<1x8x1xf32, #tpu.memory_space<vmem>>, vector<1x8x1xf32>
      %15 = vector.shape_cast %14 : vector<1x8x1xf32> to vector<8x1xf32>
      %16 = vector.broadcast %15 : vector<8x1xf32> to vector<8x128xf32>
      %17 = arith.mulf %13, %16 : vector<8x128xf32>
      %18 = tpu.iota {dimensions = array<i32: 1>} : vector<1x128xi32>
      %19 = tpu.iota {dimensions = array<i32: 0>} : vector<8x1xi32>
      %c8_i32 = arith.constant 8 : i32
      %20 = arith.muli %arg1, %c8_i32 : i32
      %21 = vector.broadcast %20 : i32 to vector<8x1xi32>
      %22 = arith.addi %21, %19 : vector<8x1xi32>
      %c1_i32 = arith.constant 1 : i32
      %23 = tpu.dynamic_rotate %17 by %c1_i32 dim 0 : vector<8x128xf32>, i32 -> vector<8x128xf32>
      %c1_i32_15 = arith.constant 1 : i32
      %24 = vector.broadcast %c1_i32_15 : i32 to vector<8x1xi32>
      %25 = arith.cmpi sge, %22, %24 : vector<8x1xi32>
      %cst_16 = arith.constant 0.000000e+00 : f32
      %26 = vector.shape_cast %25 : vector<8x1xi1> to vector<8x1xi1>
      %27 = vector.broadcast %26 : vector<8x1xi1> to vector<8x128xi1>
      %28 = vector.broadcast %cst_16 : f32 to vector<8x128xf32>
      %29 = arith.select %27, %23, %28 : vector<8x128xi1>, vector<8x128xf32>
      %c16_i32 = arith.constant 16 : i32
      %30 = vector.broadcast %c16_i32 : i32 to vector<1x128xi32>
      %31 = arith.cmpi sge, %18, %30 : vector<1x128xi32>
      %c32_i32 = arith.constant 32 : i32
      %32 = vector.broadcast %c32_i32 : i32 to vector<1x128xi32>
      %33 = arith.cmpi slt, %18, %32 : vector<1x128xi32>
      %34 = arith.andi %31, %33 : vector<1x128xi1>
      %35 = vector.shape_cast %34 : vector<1x128xi1> to vector<1x128xi1>
      %36 = vector.broadcast %35 : vector<1x128xi1> to vector<8x128xi1>
      %37 = arith.select %36, %29, %13 : vector<8x128xi1>, vector<8x128xf32>
      %38 = arith.truncf %37 : vector<8x128xf32> to vector<8x128xbf16>
      %c0_17 = arith.constant 0 : index
      %c0_18 = arith.constant 0 : index
      %39 = vector.load %arg8[%c0_17, %c0_18] : memref<8x128xbf16, #tpu.memory_space<vmem>>, vector<8x128xbf16>
      tpu.vector_store %arg8[%c0_17, %c0_18], %38 {strides = array<i32>} : memref<8x128xbf16, #tpu.memory_space<vmem>>, vector<8x128xbf16>,
    } else {
    }
    %c0 = arith.constant 0 : index
    %c0_1 = arith.constant 0 : index
    %3 = vector.load %arg8[%c0, %c0_1] : memref<8x128xbf16, #tpu.memory_space<vmem>>, vector<8x128xbf16>
    %c0_2 = arith.constant 0 : index
    %c0_3 = arith.constant 0 : index
    %4 = vector.load %arg5[%c0_2, %c0_3] : memref<128x128xbf16, #tpu.memory_space<vmem>>, vector<128x128xbf16>
    %cst = arith.constant dense<0.000000e+00> : vector<8x128xf32>
    %5 = tpu.matmul %3, %4, %cst {dimension_numbers = #tpu.dot_dimension_numbers<[1], [0], [0], [1], [0, 0, 1, 1], [], []>} : vector<8x128xbf16>, vector<128x128xbf16>, vector<8x128xf32> -> vector<8x128xf32>
    %c0_4 = arith.constant 0 : index
    %c0_5 = arith.constant 0 : index
    %6 = vector.load %arg6[%c0_4, %c0_5] : memref<1x128xf32, #tpu.memory_space<vmem>>, vector<1x128xf32>
    %7 = vector.broadcast %6 : vector<1x128xf32> to vector<8x128xf32>
    %8 = arith.addf %5, %7 : vector<8x128xf32>
    %c0_6 = arith.constant 0 : index
    %c0_7 = arith.constant 0 : index
    %c0_8 = arith.constant 0 : index
    %9 = vector.load %arg7[%c0_6, %c0_7, %c0_8] : memref<1x8x128xf32, #tpu.memory_space<vmem>>, vector<1x8x128xf32>
    %10 = vector.shape_cast %9 : vector<1x8x128xf32> to vector<8x128xf32>
    %11 = vector.shape_cast %8 : vector<8x128xf32> to vector<1x8x128xf32>
    tpu.vector_store %arg7[%c0_6, %c0_7, %c0_8], %11 {strides = array<i32>} : memref<1x8x128xf32, #tpu.memory_space<vmem>>, vector<1x8x128xf32>,
    return
  }
  func.func @transform_0(%arg0: i32, %arg1: i32, %arg2: i32) -> (i32, i32, i32) {
    %c0_i32 = arith.constant 0 : i32
    %c0_i32_0 = arith.constant 0 : i32
    return %arg0, %arg1, %c0_i32 : i32, i32, i32
  }
  func.func @transform_1(%arg0: i32, %arg1: i32, %arg2: i32) -> (i32, i32, i32) {
    %c0_i32 = arith.constant 0 : i32
    %c0_i32_0 = arith.constant 0 : i32
    return %arg0, %arg1, %c0_i32 : i32, i32, i32
  }
  func.func @transform_2(%arg0: i32, %arg1: i32, %arg2: i32) -> (i32, i32) {
    %c0_i32 = arith.constant 0 : i32
    %c0_i32_0 = arith.constant 0 : i32
    return %c0_i32, %arg2 : i32, i32
  }
  func.func @transform_3(%arg0: i32, %arg1: i32, %arg2: i32) -> (i32, i32) {
    %c0_i32 = arith.constant 0 : i32
    %c0_i32_0 = arith.constant 0 : i32
    return %c0_i32, %arg2 : i32, i32
  }
  func.func @transform_4(%arg0: i32, %arg1: i32, %arg2: i32) -> (i32, i32, i32) {
    %c0_i32 = arith.constant 0 : i32
    return %arg0, %arg1, %arg2 : i32, i32, i32
  }
}

</mosaic_0001>

<llo_original>
// kernel: tpu_custom_call.1
$region0: #{tpu_custom_call.1}
  #allocation0 [shape = 'u32[]', space=smem, size = 0x4, offset = 0x4, fixed_abs, tag = 'smem constant byte address 0x4 - core index']
  #allocation1 [shape = 'u32[144,128]{1,0:T(1,128)}', space=vmem, size = 0x12000, scoped, tag = 'internal scratch']
  #allocation2 [shape = 'bf16[8,128]{1,0:T(8,128)(2,1)}', space=vmem, size = 0x800, scoped, tag = 'scratch operand']
  %s0 = inlined_call_operand.vmem [shape: f32[2,8,1], index: 0, kind: input, shape index: {}]
  %s1 = inlined_call_operand.vmem [shape: f32[2,8,128], index: 1, kind: input, shape index: {}]
  %s2 = inlined_call_operand.hbm [shape: bf16[128,128], index: 2, kind: input, shape index: {}]
  %s3 = inlined_call_operand.vmem [shape: f32[1,128], index: 3, kind: input, shape index: {}]
  %s4 = inlined_call_operand.hbm [shape: f32[2,8,128], index: 4, kind: output, shape index: {}]
  %s5 = sld [smem:[#allocation0]]
  $region57: #{tpu_custom_call.1} parent=0
    _
  %s7 = ssub.s32 1, %s5
  %s8 = scalar_select 0, %s7, %s5
  $region1: #{tpu_custom_call.1} parent=0
    #allocation3 [shape = 'u8[32768]{0}', space=vmem, size = 0x8000, scoped, tag = 'input window, operand 2, single buffered']
    #allocation4 [shape = 's32[2]{0}', space=sflag, size = 0x8, scoped, tag = 'scoped memory for tpu_custom_call.1']
    #allocation5 [shape = 's32[2]{0}', space=sflag, size = 0x8, scoped, tag = 'scoped memory for tpu_custom_call.1']
    #allocation6 [shape = 'u8[8192]{0}', space=vmem, size = 0x2000, scoped, tag = 'output window, operand 0']
    %9 = vsyncpa [#allocation4], 0
    %10 = vsyncpa [#allocation5], 0
    %s11 = scalar_lea.sflag [#allocation5], 1
    %12 = vsyncpa %s11, 0
    loop: start=0, step=1, limit=4
    $region2: #{tpu_custom_call.1} parent=1 // loop_pre_header
      _
    $region3: #{tpu_custom_call.1} parent=1 // loop_header
      %s14 = sphi 0, %s18
      %p15 = scmp.ge.s32.totalorder %s14, 4
      %s21 = sphi 0, %s40
      %s22 = sphi 0, %s36
      %s23 = sphi 0, %s32
      %s24 = sphi 0, %s21
      %s25 = sphi 0, %s22
      %s26 = sphi 0, %s23
      %s27 = sphi 0, %s24
      %s28 = sphi 0, %s25
      %s29 = sphi 0, %s26
      %s45 = sphi 0, %s47
      %s48 = sphi 0, %s45
      %s49 = sphi 0, %s48
      %s65 = sphi 0, %s49
      %s73 = sphi 0, %s75
      %s76 = sphi 0, %s73
      %s77 = sphi 0, %s76
      %s93 = sphi 0, %s77
      %s99 = sphi 0, %s101
      %s102 = sphi 0, %s99
      %s103 = sphi 0, %s102
      %s119 = sphi 0, %s103
      %s125 = sphi 0, %s127
      %s128 = sphi 0, %s125
      %s129 = sphi 0, %s128
      %s145 = sphi 0, %s129
      %s155 = sphi 0, %s157
      %s158 = sphi 0, %s155
      %s159 = sphi 0, %s158
      %s175 = sphi 0, %s159
    $region4: #{tpu_custom_call.1} parent=1 // loop_header_branch
      %17 = sbr.rel (%p15) target = $region8
    $region5: #{tpu_custom_call.1} parent=1 // loop_body
      %s19 = ssub.s32 %s14, 1
      %s20 = ssub.s32 %s14, 2
      %s30 = sadd.s32 1, %s23
      %p31 = scmp.ge.s32.totalorder %s30, 1
      %s32 = scalar_select %p31, 0, %s30
      %s33 = sadd.s32 1, %s22
      %s34 = scalar_select %p31, %s33, %s22
      %p35 = scmp.ge.s32.totalorder %s34, 1
      %s36 = scalar_select %p35, 0, %s34
      %s37 = sadd.s32 1, %s21
      %s38 = scalar_select %p35, %s37, %s21
      %p39 = scmp.ge.s32.totalorder %s38, 2
      %s40 = scalar_select %p39, 0, %s38
      %s41 = ssub.s32 %s21, %s40
      %s42 = ssub.s32 %s22, %s36
      %s43 = sor.u32 %s41, %s42
      %p44 = scmp.eq.s32.totalorder %s43, 0
      %s46 = sadd.s32 %s45, 1
      %s47 = scalar_select %p44, %s45, %s46
      %p50 = pneg %p44
      %p51 = scmp.eq.s32.totalorder %s14, 1
      %p52 = por %p50, %p51
      %p53 = scmp.ne.s32.totalorder %s45, %s48
      %p54 = scmp.eq.s32.totalorder %s14, 0
      %p55 = por %p53, %p54
      %p56 = scmp.ne.s32.totalorder %s45, %s48
      %p57 = scmp.eq.s32.totalorder %s19, 1
      %p58 = por %p56, %p57
      %p59 = scmp.ne.s32.totalorder %s48, %s49
      %p60 = scmp.eq.s32.totalorder %s19, 0
      %p61 = por %p59, %p60
      %p62 = scmp.ne.s32.totalorder %s48, %s49
      %p63 = scmp.eq.s32.totalorder %s20, 1
      %p64 = por %p62, %p63
      %p66 = scmp.ne.s32.totalorder %s49, %s65
      %p67 = scmp.eq.s32.totalorder %s20, 0
      %p68 = por %p66, %p67
      %s69 = ssub.s32 %s21, %s40
      %s70 = ssub.s32 %s22, %s36
      %s71 = sor.u32 %s69, %s70
      %p72 = scmp.eq.s32.totalorder %s71, 0
      %s74 = sadd.s32 %s73, 1
      %s75 = scalar_select %p72, %s73, %s74
      %p78 = pneg %p72
      %p79 = scmp.eq.s32.totalorder %s14, 1
      %p80 = por %p78, %p79
      %p81 = scmp.ne.s32.totalorder %s73, %s76
      %p82 = scmp.eq.s32.totalorder %s14, 0
      %p83 = por %p81, %p82
      %p84 = scmp.ne.s32.totalorder %s73, %s76
      %p85 = scmp.eq.s32.totalorder %s19, 1
      %p86 = por %p84, %p85
      %p87 = scmp.ne.s32.totalorder %s76, %s77
      %p88 = scmp.eq.s32.totalorder %s19, 0
      %p89 = por %p87, %p88
      %p90 = scmp.ne.s32.totalorder %s76, %s77
      %p91 = scmp.eq.s32.totalorder %s20, 1
      %p92 = por %p90, %p91
      %p94 = scmp.ne.s32.totalorder %s77, %s93
      %p95 = scmp.eq.s32.totalorder %s20, 0
      %p96 = por %p94, %p95
      %s97 = ssub.s32 %s23, %s32
      %p98 = scmp.eq.s32.totalorder %s97, 0
      %s100 = sadd.s32 %s99, 1
      %s101 = scalar_select %p98, %s99, %s100
      %p104 = pneg %p98
      %p105 = scmp.eq.s32.totalorder %s14, 1
      %p106 = por %p104, %p105
      %p107 = scmp.ne.s32.totalorder %s99, %s102
      %p108 = scmp.eq.s32.totalorder %s14, 0
      %p109 = por %p107, %p108
      %p110 = scmp.ne.s32.totalorder %s99, %s102
      %p111 = scmp.eq.s32.totalorder %s19, 1
      %p112 = por %p110, %p111
      %p113 = scmp.ne.s32.totalorder %s102, %s103
      %p114 = scmp.eq.s32.totalorder %s19, 0
      %p115 = por %p113, %p114
      %p116 = scmp.ne.s32.totalorder %s102, %s103
      %p117 = scmp.eq.s32.totalorder %s20, 1
      %p118 = por %p116, %p117
      %p120 = scmp.ne.s32.totalorder %s103, %s119
      %p121 = scmp.eq.s32.totalorder %s20, 0
      %p122 = por %p120, %p121
      %s123 = ssub.s32 %s23, %s32
      %p124 = scmp.eq.s32.totalorder %s123, 0
      %s126 = sadd.s32 %s125, 1
      %s127 = scalar_select %p124, %s125, %s126
      %p130 = pneg %p124
      %p131 = scmp.eq.s32.totalorder %s14, 1
      %p132 = por %p130, %p131
      %p133 = scmp.ne.s32.totalorder %s125, %s128
      %p134 = scmp.eq.s32.totalorder %s14, 0
      %p135 = por %p133, %p134
      %p136 = scmp.ne.s32.totalorder %s125, %s128
      %p137 = scmp.eq.s32.totalorder %s19, 1
      %p138 = por %p136, %p137
      %p139 = scmp.ne.s32.totalorder %s128, %s129
      %p140 = scmp.eq.s32.totalorder %s19, 0
      %p141 = por %p139, %p140
      %p142 = scmp.ne.s32.totalorder %s128, %s129
      %p143 = scmp.eq.s32.totalorder %s20, 1
      %p144 = por %p142, %p143
      %p146 = scmp.ne.s32.totalorder %s129, %s145
      %p147 = scmp.eq.s32.totalorder %s20, 0
      %p148 = por %p146, %p147
      %s149 = ssub.s32 %s21, %s40
      %s150 = ssub.s32 %s22, %s36
      %s151 = sor.u32 %s149, %s150
      %s152 = ssub.s32 %s23, %s32
      %s153 = sor.u32 %s151, %s152
      %p154 = scmp.eq.s32.totalorder %s153, 0
      %s156 = sadd.s32 %s155, 1
      %s157 = scalar_select %p154, %s155, %s156
      %p160 = pneg %p154
      %p161 = scmp.eq.s32.totalorder %s14, 1
      %p162 = por %p160, %p161
      %p163 = scmp.ne.s32.totalorder %s155, %s158
      %p164 = scmp.eq.s32.totalorder %s14, 0
      %p165 = por %p163, %p164
      %p166 = scmp.ne.s32.totalorder %s155, %s158
      %p167 = scmp.eq.s32.totalorder %s19, 1
      %p168 = por %p166, %p167
      %p169 = scmp.ne.s32.totalorder %s158, %s159
      %p170 = scmp.eq.s32.totalorder %s19, 0
      %p171 = por %p169, %p170
      %p172 = scmp.ne.s32.totalorder %s158, %s159
      %p173 = scmp.eq.s32.totalorder %s20, 1
      %p174 = por %p172, %p173
      %p176 = scmp.ne.s32.totalorder %s159, %s175
      %p177 = scmp.eq.s32.totalorder %s20, 0
      %p178 = por %p176, %p177
      %p179 = scmp.le.s32.totalorder 1, %s14
      %p180 = scmp.lt.s32.totalorder %s14, 3
      %p181 = pnand %p179, %p180
      %p182 = pneg %p181
      // Predicated region
      $region9: #{tpu_custom_call.1} parent=5 // pred_check
        _
      $region10: #{tpu_custom_call.1} parent=5 // pred_check_branch
        %184 = sbr.rel (%p181) target = $region12
      $region11: #{tpu_custom_call.1} parent=5 // pred_region
        %s185 = ssub.s32 %s14, 1
        // Predicated region
        $region13: #{tpu_custom_call.1} parent=11 // pred_check
          %p186 = pneg %p115
        $region14: #{tpu_custom_call.1} parent=11 // pred_check_branch
          %188 = sbr.rel (%p186) target = $region16
        $region15: #{tpu_custom_call.1} parent=11 // pred_region
          %s190 = ssub.s32 1024, 1024
          %191 = vsyncadd [#allocation4], %s190
          %s192 = smul.addr %s26, 64
          %s193 = scalar_lea.hbm %s2, %s192
          %s194 = sshll.u32 [#allocation3], 4
          %s195 = int_to_ptr.vmem [resolvable:$true] %s194
          %200 = dma.hbm_to_vmem [thread:$0]  %s193, 1024, %s195, [#allocation4], 64, 64, 4
        $region16: #{tpu_custom_call.1} parent=11 // pred_fallthru
          _
        // Predicated region
        $region17: #{tpu_custom_call.1} parent=11 // pred_check
          %p201 = pneg %p141
        $region18: #{tpu_custom_call.1} parent=11 // pred_check_branch
          %203 = sbr.rel (%p201) target = $region20
        $region19: #{tpu_custom_call.1} parent=11 // pred_region
          %p204 = scmp.lt.s32.totalorder %s26, 0
          %s205 = scalar_select %p204, %s26, 0
          %s206 = scalar_lea.vmem %s3, %s205
        $region20: #{tpu_custom_call.1} parent=11 // pred_fallthru
          _
      $region12: #{tpu_custom_call.1} parent=5 // pred_fallthru
        _
      %p207 = scmp.lt.s32.totalorder %s14, 2
      // Predicated region
      $region21: #{tpu_custom_call.1} parent=5 // pred_check
        %p208 = pneg %p207
      $region22: #{tpu_custom_call.1} parent=5 // pred_check_branch
        %210 = sbr.rel (%p208) target = $region24
      $region23: #{tpu_custom_call.1} parent=5 // pred_region
        // Predicated region
        $region25: #{tpu_custom_call.1} parent=23 // pred_check
          %p211 = pneg %p55
        $region26: #{tpu_custom_call.1} parent=23 // pred_check_branch
          %213 = sbr.rel (%p211) target = $region28
        $region27: #{tpu_custom_call.1} parent=23 // pred_region
          %p214 = scmp.lt.s32.totalorder %s21, 1
          %s215 = scalar_select %p214, %s21, 1
          %p216 = scmp.lt.s32.totalorder %s22, 0
          %s217 = scalar_select %p216, %s22, 0
          %s218 = sadd.s32 %s217, %s215
          %s219 = smul.addr %s218, 8
          %s220 = scalar_lea.vmem %s0, %s219
        $region28: #{tpu_custom_call.1} parent=23 // pred_fallthru
          _
        // Predicated region
        $region29: #{tpu_custom_call.1} parent=23 // pred_check
          %p221 = pneg %p83
        $region30: #{tpu_custom_call.1} parent=23 // pred_check_branch
          %223 = sbr.rel (%p221) target = $region32
        $region31: #{tpu_custom_call.1} parent=23 // pred_region
          %p224 = scmp.lt.s32.totalorder %s21, 1
          %s225 = scalar_select %p224, %s21, 1
          %p226 = scmp.lt.s32.totalorder %s22, 0
          %s227 = scalar_select %p226, %s22, 0
          %s228 = sadd.s32 %s227, %s225
          %s229 = smul.addr %s228, 8
          %s230 = scalar_lea.vmem %s1, %s229
        $region32: #{tpu_custom_call.1} parent=23 // pred_fallthru
          _
      $region24: #{tpu_custom_call.1} parent=5 // pred_fallthru
        _
      %p231 = scmp.le.s32.totalorder 1, %s14
      %p232 = scmp.lt.s32.totalorder %s14, 3
      %p233 = pnand %p231, %p232
      %p234 = pneg %p233
      // Predicated region
      $region33: #{tpu_custom_call.1} parent=5 // pred_check
        _
      $region34: #{tpu_custom_call.1} parent=5 // pred_check_branch
        %236 = sbr.rel (%p233) target = $region36
      $region35: #{tpu_custom_call.1} parent=5 // pred_region
        %s237 = ssub.s32 %s14, 1
        // Predicated region
        $region37: #{tpu_custom_call.1} parent=35 // pred_check
          %p238 = pneg %p115
        $region38: #{tpu_custom_call.1} parent=35 // pred_check_branch
          %240 = sbr.rel (%p238) target = $region40
        $region39: #{tpu_custom_call.1} parent=35 // pred_region
          %241 = dma.done [#allocation4], 1024
        $region40: #{tpu_custom_call.1} parent=35 // pred_fallthru
          _
        %p242 = scmp.lt.s32.totalorder %s24, 1
        %s243 = scalar_select %p242, %s24, 1
        %p244 = scmp.lt.s32.totalorder %s25, 0
        %s245 = scalar_select %p244, %s25, 0
        %s246 = sadd.s32 %s245, %s243
        %s247 = smul.addr %s246, 8
        %s248 = scalar_lea.vmem %s0, %s247
        %p249 = pneg %p61
        %p250 = pneg %p58
        %p251 = scmp.lt.s32.totalorder %s24, 1
        %s252 = scalar_select %p251, %s24, 1
        %p253 = scmp.lt.s32.totalorder %s25, 0
        %s254 = scalar_select %p253, %s25, 0
        %s255 = sadd.s32 %s254, %s252
        %s256 = smul.addr %s255, 8
        %s257 = scalar_lea.vmem %s1, %s256
        %p258 = pneg %p89
        %p259 = pneg %p86
        %p260 = pneg %p115
        %p261 = pneg %p112
        %p262 = scmp.lt.s32.totalorder %s26, 0
        %s263 = scalar_select %p262, %s26, 0
        %s264 = scalar_lea.vmem %s3, %s263
        %p265 = pneg %p141
        %p266 = pneg %p138
        %p267 = pneg %p171
        %p268 = pneg %p168
        %s269 = sand.u32 %s158, 1
        %s270 = scalar_lea.sflag [#allocation5], %s269
        %s271 = sand.u32 %s158, 1
        %s272 = smul.addr %s271, 8
        %s273 = scalar_lea.vmem [#allocation6], %s272
        %p274 = scmp.lt.s32.totalorder %s24, 1
        %s275 = scalar_select %p274, %s24, 1
        %p276 = scmp.lt.s32.totalorder %s25, 0
        %s277 = scalar_select %p276, %s25, 0
        %s278 = sadd.s32 %s277, %s275
        %s279 = smul.addr %s278, 8
        %s280 = scalar_lea.vmem %s0, %s279
        %p281 = scmp.lt.s32.totalorder %s24, 1
        %s282 = scalar_select %p281, %s24, 1
        %p283 = scmp.lt.s32.totalorder %s25, 0
        %s284 = scalar_select %p283, %s25, 0
        %s285 = sadd.s32 %s284, %s282
        %s286 = smul.addr %s285, 8
        %s287 = scalar_lea.vmem %s1, %s286
        %p288 = scmp.lt.s32.totalorder %s26, 0
        %s289 = scalar_select %p288, %s26, 0
        %s290 = scalar_lea.vmem %s3, %s289
        %p292 = scmp.eq.s32.totalorder %s26, 0
        // Predicated region
        $region41: #{tpu_custom_call.1} parent=35 // pred_check
          %p293 = pneg %p292
        $region42: #{tpu_custom_call.1} parent=35 // pred_check_branch
          %295 = sbr.rel (%p293) target = $region44
        $region43: #{tpu_custom_call.1} parent=35 // pred_region
          %v296 = vld [vmem:[%s287] sm:$0xff]
          %v297 = vld [vmem:[%s280] sm:$0xff]
          %299 = vset.pattern.permute.xlu0 0
          %300 = vperm.xlu0 %299, %v297
          %v301 = vpop.permute.xlu0 %300
          %v303 = vmul.f32 %v296, %v301
          %v304 = vlaneseq
          %v305 = vand.u32 %v304, 127
          %v306 = vlaneseq
          %v307 = vshrl.u32 %v306, 7
          %s308 = smul.u32 %s25, 8
          %v309 = vstv %s308
          %v310 = vadd.s32 %v309, %v307
          %v311 = vrot.slane %v303, 7
          %vm312 = vcmp.ge.s32.totalorder %v310, 1
          %v313 = vsel %vm312, 1, 0
          %vm314 = vcmp.eq.s32.totalorder %v313, 1
          %v315 = vsel %vm314, %v311, 0.0
          %vm316 = vcmp.ge.s32.totalorder %v305, 16
          %vm317 = vcmp.lt.s32.totalorder %v305, 32
          %vm318 = vmand %vm316, %vm317
          %v319 = vsel %vm318, 1, 0
          %vm320 = vcmp.eq.s32.totalorder %v319, 1
          %v321 = vsel %vm320, %v315, %v296
          %v322 = vpack.c.bf16 %v321, %v321
          %323 = vst [vmem:[#allocation2] sm:$0xf] %v322
        $region44: #{tpu_custom_call.1} parent=35 // pred_fallthru
          _
        %v324 = vld [vmem:[#allocation2] sm:$0xf]
        %v325 = vld [vmem:[#allocation3] sm:$0xf]
        %v326 = vld [vmem:[#allocation3 + $0x4] sm:$0xf]
        %v327 = vld [vmem:[#allocation3 + $0x8] sm:$0xf]
        %v328 = vld [vmem:[#allocation3 + $0xc] sm:$0xf]
        %v329 = vld [vmem:[#allocation3 + $0x10] sm:$0xf]
        %v330 = vld [vmem:[#allocation3 + $0x14] sm:$0xf]
        %v331 = vld [vmem:[#allocation3 + $0x18] sm:$0xf]
        %v332 = vld [vmem:[#allocation3 + $0x1c] sm:$0xf]
        %v333 = vld [vmem:[#allocation3 + $0x20] sm:$0xf]
        %v334 = vld [vmem:[#allocation3 + $0x24] sm:$0xf]
        %v335 = vld [vmem:[#allocation3 + $0x28] sm:$0xf]
        %v336 = vld [vmem:[#allocation3 + $0x2c] sm:$0xf]
        %v337 = vld [vmem:[#allocation3 + $0x30] sm:$0xf]
        %v338 = vld [vmem:[#allocation3 + $0x34] sm:$0xf]
        %v339 = vld [vmem:[#allocation3 + $0x38] sm:$0xf]
        %v340 = vld [vmem:[#allocation3 + $0x3c] sm:$0xf]
        %v341 = vld [vmem:[%s290] sm:$0x1]
        %v343 = vlaneseq
        %v344 = vshrl.u32 %v343, 7
        %v345 = vsub.s32 0, %v344
        %v346 = vrot.slane %v341, %v345
        %v364 = vunpack.c.l.b16 %v325
        %v365 = vunpack.c.l.b16 %v326
        %v366 = vunpack.c.l.b16 %v327
        %v367 = vunpack.c.l.b16 %v328
        %v368 = vunpack.c.l.b16 %v329
        %v369 = vunpack.c.l.b16 %v330
        %v370 = vunpack.c.l.b16 %v331
        %v371 = vunpack.c.l.b16 %v332
        %v372 = vunpack.c.l.b16 %v333
        %v373 = vunpack.c.l.b16 %v334
        %v374 = vunpack.c.l.b16 %v335
        %v375 = vunpack.c.l.b16 %v336
        %v376 = vunpack.c.l.b16 %v337
        %v377 = vunpack.c.l.b16 %v338
        %v378 = vunpack.c.l.b16 %v339
        %v379 = vunpack.c.l.b16 %v340
        %v380 = vpack.c.b16 %v365, %v364
        %v381 = vpack.c.b16 %v367, %v366
        %v382 = vpack.c.b16 %v369, %v368
        %v383 = vpack.c.b16 %v371, %v370
        %v384 = vpack.c.b16 %v373, %v372
        %v385 = vpack.c.b16 %v375, %v374
        %v386 = vpack.c.b16 %v377, %v376
        %v387 = vpack.c.b16 %v379, %v378
        %396 = vmatprep.subr.bf16.mxu0 0
        %397 = vmatpush1.bf16.msra.mxu0 %v380
        %398 = vmatprep.subr.bf16.mxu0 0
        %399 = vmatpush1.bf16.msra.mxu0 %v381
        %400 = vmatprep.subr.bf16.mxu0 0
        %401 = vmatpush1.bf16.msra.mxu0 %v382
        %402 = vmatprep.subr.bf16.mxu0 0
        %403 = vmatpush1.bf16.msra.mxu0 %v383
        %404 = vmatprep.subr.bf16.mxu0 0
        %405 = vmatpush1.bf16.msra.mxu0 %v384
        %406 = vmatprep.subr.bf16.mxu0 0
        %407 = vmatpush1.bf16.msra.mxu0 %v385
        %408 = vmatprep.subr.bf16.mxu0 0
        %409 = vmatpush1.bf16.msra.mxu0 %v386
        %410 = vmatprep.subr.bf16.mxu0 0
        %411 = vmatpush1.bf16.msra.mxu0 %v387
        %412 = vmatprep.subr.bf16.mxu0 0
        %413 = vmatpush1.bf16.msra.mxu0 0
        %414 = vmatprep.subr.bf16.mxu0 0
        %415 = vmatpush1.bf16.msra.mxu0 0
        %416 = vmatprep.subr.bf16.mxu0 0
        %417 = vmatpush1.bf16.msra.mxu0 0
        %418 = vmatprep.subr.bf16.mxu0 0
        %419 = vmatpush1.bf16.msra.mxu0 0
        %420 = vmatprep.subr.bf16.mxu0 0
        %421 = vmatpush1.bf16.msra.mxu0 0
        %422 = vmatprep.subr.bf16.mxu0 0
        %423 = vmatpush1.bf16.msra.mxu0 0
        %424 = vmatprep.subr.bf16.mxu0 0
        %425 = vmatpush1.bf16.msra.mxu0 0
        %426 = vmatprep.subr.bf16.mxu0 0
        %427 = vmatpush1.bf16.msra.mxu0 0
        %428 = vmatprep.mubr.bf16.mxu0 0
        %429 = vmatmul.mubr.bf16.gmra.mrb[0].mxu0 %v324
        %v430 = vpop.f32.mrb[0].mxu0
        %v431 = vadd.f32 %v346, %v430
        %v432 = vpop.f32.mrb[0].mxu0
        %v433 = vpop.f32.mrb[0].mxu0
        %v434 = vpop.f32.mrb[0].mxu0
        %435 = vdwg.mxu0
        %436 = vst [vmem:[%s273] sm:$0xff] %v431
        %s437 = sand.u32 %s158, 1
        %s438 = scalar_lea.sflag [#allocation5], %s437
        %s439 = sand.u32 %s158, 1
        %s440 = smul.addr %s439, 8
        %s441 = scalar_lea.vmem [#allocation6], %s440
        // Predicated region
        $region45: #{tpu_custom_call.1} parent=35 // pred_check
          %p442 = pneg %p168
        $region46: #{tpu_custom_call.1} parent=35 // pred_check_branch
          %444 = sbr.rel (%p442) target = $region48
        $region47: #{tpu_custom_call.1} parent=35 // pred_region
          %s446 = ssub.s32 128, 128
          %447 = vsyncadd %s438, %s446
          %s448 = sadd.s32 %s26, %s25
          %s449 = sadd.s32 %s448, %s24
          %s450 = smul.addr %s449, 128
          %s451 = scalar_lea.hbm %s4, %s450
          %s453 = sshll.u32 %s441, 4
          %s454 = int_to_ptr.vmem [resolvable:$true] %s453
          %456 = dma.vmem_to_hbm [thread:$0]  %s454, 128, %s451, %s438
        $region48: #{tpu_custom_call.1} parent=35 // pred_fallthru
          _
      $region36: #{tpu_custom_call.1} parent=5 // pred_fallthru
        _
      %p457 = scmp.le.s32.totalorder 2, %s14
      // Predicated region
      $region49: #{tpu_custom_call.1} parent=5 // pred_check
        %p458 = pneg %p457
      $region50: #{tpu_custom_call.1} parent=5 // pred_check_branch
        %460 = sbr.rel (%p458) target = $region52
      $region51: #{tpu_custom_call.1} parent=5 // pred_region
        %s461 = ssub.s32 %s14, 2
        // Predicated region
        $region53: #{tpu_custom_call.1} parent=51 // pred_check
          %p462 = pneg %p174
        $region54: #{tpu_custom_call.1} parent=51 // pred_check_branch
          %464 = sbr.rel (%p462) target = $region56
        $region55: #{tpu_custom_call.1} parent=51 // pred_region
          %s465 = sand.u32 %s159, 1
          %s466 = scalar_lea.sflag [#allocation5], %s465
          %s467 = sand.u32 %s159, 1
          %s468 = smul.addr %s467, 8
          %s469 = scalar_lea.vmem [#allocation6], %s468
          %470 = dma.done %s466, 128
        $region56: #{tpu_custom_call.1} parent=51 // pred_fallthru
          _
      $region52: #{tpu_custom_call.1} parent=5 // pred_fallthru
        _
    $region6: #{tpu_custom_call.1} parent=1 // loop_footer
      %s18 = sadd.s32 1, %s14
    $region7: #{tpu_custom_call.1} parent=1 // loop_footer_branch
      %13 = sbr.rel target = $region3
    $region8: #{tpu_custom_call.1} parent=1 // loop_exit
      _
    %471 = vsyncpa [#allocation4], 1
    %s472 = scalar_lea.sflag [#allocation4], 1
    %473 = vsyncpa %s472, 1
    %474 = vsyncpa [#allocation5], 1
    %s475 = scalar_lea.sflag [#allocation5], 1
    %476 = vsyncpa %s475, 1

</llo_original>
